<compile_context>
chip_gen: v5e
topology: v5e:2x2
jax: 0.10.0
libtpu: 0.0.40
codegen_flags: <defaults>
</compile_context>

<pallas_src>
import functools

import jax
import jax.numpy as jnp
from jax.experimental import pallas as pl
from jax.experimental.pallas import tpu as pltpu


def _round_up(x, m):
    return ((x + m - 1) // m) * m


def _mlp_heb_kernel(s_ref, w1_ref, w2_ref, w3_ref, out_ref):
    # s_ref: (TB, IN).  Weights pre-transposed + lane-padded in the wrapper:
    #   w1_ref: (IN, PACK), w2_ref: (PACK, PACK), w3_ref: (PACK, PACK).
    # Each matmul's result already sits in its final output lanes, so the
    # epilogue is two VPU adds and one unmasked lane-dense store.
    s = s_ref[...]
    x1p = jnp.tanh(jnp.dot(s, w1_ref[...],
                           preferred_element_type=jnp.float32))    # x1 in lanes [0:64)
    x2p = jnp.tanh(jnp.dot(x1p, w2_ref[...],
                           preferred_element_type=jnp.float32))    # x2 in lanes [64:96)
    op = jnp.dot(x2p, w3_ref[...],
                 preferred_element_type=jnp.float32)               # o in lanes [96:96+A)
    out_ref[...] = x1p + x2p + op


def _mlp_heb_batched_impl(s2d, w1, w2, w3):
    """s2d: (B, input_space) f32; weights in PyTorch (out, in) layout.
    Returns (x1, x2, o) with shapes (B, 64), (B, 32), (B, action_space)."""
    B, input_space = s2d.shape
    h1 = w1.shape[0]               # 64
    h2 = w2.shape[0]               # 32
    act = w3.shape[0]              # action_space

    total = h1 + h2 + act
    pack = _round_up(total, 128)   # lane-dense packed output width

    # --- one-time weight prep: transpose to (in, out) and place each layer's
    # output in its final lane range (rest is exact zeros). ---
    w1p = jnp.zeros((input_space, pack), jnp.float32).at[:, :h1].set(w1.T)
    w2p = jnp.zeros((pack, pack), jnp.float32).at[:h1, h1:h1 + h2].set(w2.T)
    w3p = jnp.zeros((pack, pack), jnp.float32).at[h1:h1 + h2,
                                                  h1 + h2:h1 + h2 + act].set(w3.T)

    # --- batch tiling: rows padded to a multiple of 8; tiles up to 1024 rows;
    # force an even number (>=2) of grid steps for v7x's two TensorCores. ---
    b_pad = _round_up(B, 8)
    if b_pad >= 16:
        nb = max(2, pl.cdiv(b_pad, 1024))
        nb = nb + (nb % 2)                       # even step count
        tb = _round_up(pl.cdiv(b_pad, nb), 8)    # <= 1024, multiple of 8
        b_pad = _round_up(b_pad, tb)
        nb = b_pad // tb
    else:
        tb = b_pad
        nb = 1

    s_padded = jnp.pad(s2d, ((0, b_pad - B), (0, 0)))

    # Explicit VMEM budget: double-buffered in/out tiles + resident weights.
    vmem_bytes = 4 * (2 * tb * (input_space + pack)
                      + 2 * (input_space * pack + 2 * pack * pack))
    vmem_bytes = int(min(max(vmem_bytes + (4 << 20), 8 << 20), 32 << 20))

    packed = pl.pallas_call(
        _mlp_heb_kernel,
        out_shape=jax.ShapeDtypeStruct((b_pad, pack), jnp.float32),
        grid=(nb,),
        in_specs=[
            pl.BlockSpec((tb, input_space), lambda i: (i, 0)),
            # Weight blocks: constant block index -> fetched once, stay resident.
            pl.BlockSpec((input_space, pack), lambda i: (0, 0)),
            pl.BlockSpec((pack, pack), lambda i: (0, 0)),
            pl.BlockSpec((pack, pack), lambda i: (0, 0)),
        ],
        out_specs=pl.BlockSpec((tb, pack), lambda i: (i, 0)),
        compiler_params=pltpu.CompilerParams(
            dimension_semantics=("parallel",),
            vmem_limit_bytes=vmem_bytes),
    )(s_padded, w1p, w2p, w3p)

    x1 = packed[:B, 0:h1]
    x2 = packed[:B, h1:h1 + h2]
    o = packed[:B, h1 + h2:h1 + h2 + act]
    return x1, x2, o


# Pad + pallas_call + slicing fused into a single compiled program.
_mlp_heb_batched = jax.jit(_mlp_heb_batched_impl)


def mlp_heb_forward(ob, w1, w2, w3):
    """ob: tuple/list; forward uses ob[0] as the state (1-D (input_space,) or
    batched (B, input_space)).  Weights in PyTorch (out, in) layout.
    Returns (state, x1, x2, o) matching the torch module's forward."""
    state = jnp.asarray(ob[0], jnp.float32)          # torch.as_tensor(ob[0]).float()
    single = state.ndim == 1
    s2d = state.reshape(1, -1) if single else state

    w1 = jnp.asarray(w1, jnp.float32)
    w2 = jnp.asarray(w2, jnp.float32)
    w3 = jnp.asarray(w3, jnp.float32)

    x1, x2, o = _mlp_heb_batched(s2d, w1, w2, w3)

    if single:
        return state, x1[0], x2[0], o[0]
    return state, x1, x2, o


if __name__ == "__main__":
    input_space = 16
    action_space = 8
    batch = 64

    key = jax.random.PRNGKey(0)
    k_ob, k_b, k1, k2, k3 = jax.random.split(key, 5)

    # Single observation (exact torch-module semantics) and a batch of them.
    ob0 = jax.random.normal(k_ob, (input_space,), dtype=jnp.float32)
    obs_batch = jax.random.normal(k_b, (batch, input_space), dtype=jnp.float32)

    # "nn.Linear(bias=False)"-shaped weights (out, in).
    w1 = jax.random.uniform(k1, (64, input_space), jnp.float32,
                            minval=-1.0, maxval=1.0) / jnp.sqrt(input_space)
    w2 = jax.random.uniform(k2, (32, 64), jnp.float32,
                            minval=-1.0, maxval=1.0) / jnp.sqrt(64.0)
    w3 = jax.random.uniform(k3, (action_space, 32), jnp.float32,
                            minval=-1.0, maxval=1.0) / jnp.sqrt(32.0)

    # --- single-observation path (matches the torch module exactly) ---
    state, x1, x2, o = mlp_heb_forward((ob0,), w1, w2, w3)
    jax.block_until_ready((state, x1, x2, o))

    ref_state = ob0.astype(jnp.float32)
    ref_x1 = jnp.tanh(ref_state @ w1.T)
    ref_x2 = jnp.tanh(ref_x1 @ w2.T)
    ref_o = ref_x2 @ w3.T
    assert state.shape == (input_space,) and x1.shape == (64,)
    assert x2.shape == (32,) and o.shape == (action_space,)
    assert jnp.allclose(state, ref_state, atol=1e-5)
    assert jnp.allclose(x1, ref_x1, atol=1e-5)
    assert jnp.allclose(x2, ref_x2, atol=1e-5)
    assert jnp.allclose(o, ref_o, atol=1e-5)

    # --- batched path (>=2 parallel grid steps -> both TCs busy on v7x) ---
    state_b, x1_b, x2_b, o_b = mlp_heb_forward((obs_batch,), w1, w2, w3)
    jax.block_until_ready((state_b, x1_b, x2_b, o_b))

    ref_x1_b = jnp.tanh(obs_batch @ w1.T)
    ref_x2_b = jnp.tanh(ref_x1_b @ w2.T)
    ref_o_b = ref_x2_b @ w3.T
    assert x1_b.shape == (batch, 64) and x2_b.shape == (batch, 32)
    assert o_b.shape == (batch, action_space)
    assert jnp.allclose(state_b, obs_batch, atol=1e-5)
    assert jnp.allclose(x1_b, ref_x1_b, atol=1e-5)
    assert jnp.allclose(x2_b, ref_x2_b, atol=1e-5)
    assert jnp.allclose(o_b, ref_o_b, atol=1e-5)

    print("KERNEL_OK")
</pallas_src>

<mosaic_0001>
module attributes {stable_mosaic.version = 11 : i64} {
  func.func @_mlp_heb_kernel(%arg0: i32, %arg1: memref<8x16xf32, #tpu.memory_space<vmem>>, %arg2: memref<16x128xf32, #tpu.memory_space<vmem>>, %arg3: memref<128x128xf32, #tpu.memory_space<vmem>>, %arg4: memref<128x128xf32, #tpu.memory_space<vmem>>, %arg5: memref<8x128xf32, #tpu.memory_space<vmem>>) attributes {dimension_semantics = [#tpu.dimension_semantics<parallel>], iteration_bounds = array<i64: 1>, scalar_prefetch = 0 : i64, scratch_operands = 0 : i64, tpu.core_type = #tpu.core_type<tc>, window_params = [{transform_indices = @transform_0, window_bounds = array<i64: 8, 16>}, {pipeline_mode = #tpu.pipeline_mode<synchronous>, transform_indices = @transform_1, window_bounds = array<i64: 16, 128>}, {pipeline_mode = #tpu.pipeline_mode<synchronous>, transform_indices = @transform_2, window_bounds = array<i64: 128, 128>}, {pipeline_mode = #tpu.pipeline_mode<synchronous>, transform_indices = @transform_3, window_bounds = array<i64: 128, 128>}, {transform_indices = @transform_4, window_bounds = array<i64: 8, 128>}]} {
    %c0 = arith.constant 0 : index
    %c0_0 = arith.constant 0 : index
    %0 = vector.load %arg1[%c0, %c0_0] : memref<8x16xf32, #tpu.memory_space<vmem>>, vector<8x16xf32>
    %c0_1 = arith.constant 0 : index
    %c0_2 = arith.constant 0 : index
    %1 = vector.load %arg2[%c0_1, %c0_2] : memref<16x128xf32, #tpu.memory_space<vmem>>, vector<16x128xf32>
    %cst = arith.constant dense<0.000000e+00> : vector<8x128xf32>
    %2 = tpu.matmul %0, %1, %cst {dimension_numbers = #tpu.dot_dimension_numbers<[1], [0], [0], [1], [0, 0, 1, 1], [], []>} : vector<8x16xf32>, vector<16x128xf32>, vector<8x128xf32> -> vector<8x128xf32>
    %3 = math.tanh %2 : vector<8x128xf32>
    %c0_3 = arith.constant 0 : index
    %c0_4 = arith.constant 0 : index
    %4 = vector.load %arg3[%c0_3, %c0_4] : memref<128x128xf32, #tpu.memory_space<vmem>>, vector<128x128xf32>
    %cst_5 = arith.constant dense<0.000000e+00> : vector<8x128xf32>
    %5 = tpu.matmul %3, %4, %cst_5 {dimension_numbers = #tpu.dot_dimension_numbers<[1], [0], [0], [1], [0, 0, 1, 1], [], []>} : vector<8x128xf32>, vector<128x128xf32>, vector<8x128xf32> -> vector<8x128xf32>
    %6 = math.tanh %5 : vector<8x128xf32>
    %c0_6 = arith.constant 0 : index
    %c0_7 = arith.constant 0 : index
    %7 = vector.load %arg4[%c0_6, %c0_7] : memref<128x128xf32, #tpu.memory_space<vmem>>, vector<128x128xf32>
    %cst_8 = arith.constant dense<0.000000e+00> : vector<8x128xf32>
    %8 = tpu.matmul %6, %7, %cst_8 {dimension_numbers = #tpu.dot_dimension_numbers<[1], [0], [0], [1], [0, 0, 1, 1], [], []>} : vector<8x128xf32>, vector<128x128xf32>, vector<8x128xf32> -> vector<8x128xf32>
    %9 = arith.addf %3, %6 : vector<8x128xf32>
    %10 = arith.addf %9, %8 : vector<8x128xf32>
    %c0_9 = arith.constant 0 : index
    %c0_10 = arith.constant 0 : index
    %11 = vector.load %arg5[%c0_9, %c0_10] : memref<8x128xf32, #tpu.memory_space<vmem>>, vector<8x128xf32>
    tpu.vector_store %arg5[%c0_9, %c0_10], %10 {strides = array<i32>} : memref<8x128xf32, #tpu.memory_space<vmem>>, vector<8x128xf32>,
    return
  }
  func.func @transform_0(%arg0: i32) -> (i32, i32) {
    %c0_i32 = arith.constant 0 : i32
    %c0_i32_0 = arith.constant 0 : i32
    return %arg0, %c0_i32 : i32, i32
  }
  func.func @transform_1(%arg0: i32) -> (i32, i32) {
    %c0_i32 = arith.constant 0 : i32
    %c0_i32_0 = arith.constant 0 : i32
    %c0_i32_1 = arith.constant 0 : i32
    return %c0_i32, %c0_i32_0 : i32, i32
  }
  func.func @transform_2(%arg0: i32) -> (i32, i32) {
    %c0_i32 = arith.constant 0 : i32
    %c0_i32_0 = arith.constant 0 : i32
    %c0_i32_1 = arith.constant 0 : i32
    return %c0_i32, %c0_i32_0 : i32, i32
  }
  func.func @transform_3(%arg0: i32) -> (i32, i32) {
    %c0_i32 = arith.constant 0 : i32
    %c0_i32_0 = arith.constant 0 : i32
    %c0_i32_1 = arith.constant 0 : i32
    return %c0_i32, %c0_i32_0 : i32, i32
  }
  func.func @transform_4(%arg0: i32) -> (i32, i32) {
    %c0_i32 = arith.constant 0 : i32
    %c0_i32_0 = arith.constant 0 : i32
    return %arg0, %c0_i32 : i32, i32
  }
}

</mosaic_0001>

<llo_original>
// kernel: _mlp_heb_batched_impl.1
$region0: #{_mlp_heb_batched_impl.1}
  #allocation0 [shape = 'u32[]', space=smem, size = 0x4, offset = 0x4, fixed_abs, tag = 'smem constant byte address 0x4 - core index']
  #allocation1 [shape = 'u32[72,128]{1,0:T(1,128)}', space=vmem, size = 0x9000, scoped, tag = 'internal scratch']
  %s0 = inlined_call_operand.vmem [shape: f32[8,16], index: 0, kind: input, shape index: {}]
  %s1 = inlined_call_operand.vmem [shape: f32[16,128], index: 1, kind: input, shape index: {}]
  %s2 = inlined_call_operand.vmem [shape: f32[128,128], index: 2, kind: input, shape index: {}]
  %s3 = inlined_call_operand.vmem [shape: f32[128,128], index: 3, kind: input, shape index: {}]
  %s4 = inlined_call_operand.vmem [shape: f32[8,128], index: 4, kind: output, shape index: {}]
  %s5 = sld [smem:[#allocation0]]
  $region26: #{_mlp_heb_batched_impl.1} parent=0
    _
  %s7 = ssub.s32 1, %s5
  %s8 = scalar_select 0, %s7, %s5
  // Predicated region
  $region2: #{_mlp_heb_batched_impl.1} parent=0 // pred_check
    _
  $region3: #{_mlp_heb_batched_impl.1} parent=0 // pred_check_branch
    %10 = sbr.rel (0) target = $region5
  $region4: #{_mlp_heb_batched_impl.1} parent=0 // pred_region
    _
  $region5: #{_mlp_heb_batched_impl.1} parent=0 // pred_fallthru
    _
  // Predicated region
  $region6: #{_mlp_heb_batched_impl.1} parent=0 // pred_check
    _
  $region7: #{_mlp_heb_batched_impl.1} parent=0 // pred_check_branch
    %12 = sbr.rel (0) target = $region9
  $region8: #{_mlp_heb_batched_impl.1} parent=0 // pred_region
    _
  $region9: #{_mlp_heb_batched_impl.1} parent=0 // pred_fallthru
    _
  // Predicated region
  $region10: #{_mlp_heb_batched_impl.1} parent=0 // pred_check
    _
  $region11: #{_mlp_heb_batched_impl.1} parent=0 // pred_check_branch
    %14 = sbr.rel (0) target = $region13
  $region12: #{_mlp_heb_batched_impl.1} parent=0 // pred_region
    _
  $region13: #{_mlp_heb_batched_impl.1} parent=0 // pred_fallthru
    _
  // Predicated region
  $region14: #{_mlp_heb_batched_impl.1} parent=0 // pred_check
    _
  $region15: #{_mlp_heb_batched_impl.1} parent=0 // pred_check_branch
    %16 = sbr.rel (0) target = $region17
  $region16: #{_mlp_heb_batched_impl.1} parent=0 // pred_region
    _
  $region17: #{_mlp_heb_batched_impl.1} parent=0 // pred_fallthru
    _
  %v17 = vld [vmem:[%s0] sm:$0xff]
  %v18 = vld [vmem:[%s1] sm:$0xff]
  %v19 = vld [vmem:[%s1 + $0x8] sm:$0xff]
  %vm20 = vcmask 130048
  %v22 = vsel %vm20, %v17, 0
  %24 = vmatpush.msra.mxu0 0.0
  %25 = vmatpush.msra.mxu0 0.0
  %26 = vmatpush.msra.mxu0 0.0
  %27 = vmatpush.msra.mxu0 0.0
  %28 = vmatpush.msra.mxu0 0.0
  %29 = vmatpush.msra.mxu0 0.0
  %30 = vmatpush.msra.mxu0 0.0
  %31 = vmatpush.msra.mxu0 0.0
  %32 = vmatpush.msra.mxu0 0.0
  %33 = vmatpush.msra.mxu0 0.0
  %34 = vmatpush.msra.mxu0 0.0
  %35 = vmatpush.msra.mxu0 0.0
  %36 = vmatpush.msra.mxu0 0.0
  %37 = vmatpush.msra.mxu0 0.0
  %38 = vmatpush.msra.mxu0 %v19
  %39 = vmatpush.msra.mxu0 %v18
  %40 = vmatmul.f32.gmra.mxu0 %v22
  %v41 = vpop.f32.mrf.mxu0
  %v42 = vadd.f32 0.0, %v41
  %43 = vdwg.mxu0
  %v44 = vtanh.pop %v42
  %v45 = vld [vmem:[%s2] sm:$0xff]
  %v46 = vld [vmem:[%s2 + $0x8] sm:$0xff]
  %v47 = vld [vmem:[%s2 + $0x10] sm:$0xff]
  %v48 = vld [vmem:[%s2 + $0x18] sm:$0xff]
  %v49 = vld [vmem:[%s2 + $0x20] sm:$0xff]
  %v50 = vld [vmem:[%s2 + $0x28] sm:$0xff]
  %v51 = vld [vmem:[%s2 + $0x30] sm:$0xff]
  %v52 = vld [vmem:[%s2 + $0x38] sm:$0xff]
  %v53 = vld [vmem:[%s2 + $0x40] sm:$0xff]
  %v54 = vld [vmem:[%s2 + $0x48] sm:$0xff]
  %v55 = vld [vmem:[%s2 + $0x50] sm:$0xff]
  %v56 = vld [vmem:[%s2 + $0x58] sm:$0xff]
  %v57 = vld [vmem:[%s2 + $0x60] sm:$0xff]
  %v58 = vld [vmem:[%s2 + $0x68] sm:$0xff]
  %v59 = vld [vmem:[%s2 + $0x70] sm:$0xff]
  %v60 = vld [vmem:[%s2 + $0x78] sm:$0xff]
  %61 = vmatpush.msra.mxu0 %v60
  %62 = vmatpush.msra.mxu0 %v59
  %63 = vmatpush.msra.mxu0 %v58
  %64 = vmatpush.msra.mxu0 %v57
  %65 = vmatpush.msra.mxu0 %v56
  %66 = vmatpush.msra.mxu0 %v55
  %67 = vmatpush.msra.mxu0 %v54
  %68 = vmatpush.msra.mxu0 %v53
  %69 = vmatpush.msra.mxu0 %v52
  %70 = vmatpush.msra.mxu0 %v51
  %71 = vmatpush.msra.mxu0 %v50
  %72 = vmatpush.msra.mxu0 %v49
  %73 = vmatpush.msra.mxu0 %v48
  %74 = vmatpush.msra.mxu0 %v47
  %75 = vmatpush.msra.mxu0 %v46
  %76 = vmatpush.msra.mxu0 %v45
  %77 = vmatmul.f32.gmra.mxu0 %v44
  %v78 = vpop.f32.mrf.mxu0
  %v79 = vadd.f32 0.0, %v78
  %80 = vdwg.mxu0
  %v81 = vtanh.pop %v79
  %v82 = vld [vmem:[%s3] sm:$0xff]
  %v83 = vld [vmem:[%s3 + $0x8] sm:$0xff]
  %v84 = vld [vmem:[%s3 + $0x10] sm:$0xff]
  %v85 = vld [vmem:[%s3 + $0x18] sm:$0xff]
  %v86 = vld [vmem:[%s3 + $0x20] sm:$0xff]
  %v87 = vld [vmem:[%s3 + $0x28] sm:$0xff]
  %v88 = vld [vmem:[%s3 + $0x30] sm:$0xff]
  %v89 = vld [vmem:[%s3 + $0x38] sm:$0xff]
  %v90 = vld [vmem:[%s3 + $0x40] sm:$0xff]
  %v91 = vld [vmem:[%s3 + $0x48] sm:$0xff]
  %v92 = vld [vmem:[%s3 + $0x50] sm:$0xff]
  %v93 = vld [vmem:[%s3 + $0x58] sm:$0xff]
  %v94 = vld [vmem:[%s3 + $0x60] sm:$0xff]
  %v95 = vld [vmem:[%s3 + $0x68] sm:$0xff]
  %v96 = vld [vmem:[%s3 + $0x70] sm:$0xff]
  %v97 = vld [vmem:[%s3 + $0x78] sm:$0xff]
  %98 = vmatpush.msra.mxu0 %v97
  %99 = vmatpush.msra.mxu0 %v96
  %100 = vmatpush.msra.mxu0 %v95
  %101 = vmatpush.msra.mxu0 %v94
  %102 = vmatpush.msra.mxu0 %v93
  %103 = vmatpush.msra.mxu0 %v92
  %104 = vmatpush.msra.mxu0 %v91
  %105 = vmatpush.msra.mxu0 %v90
  %106 = vmatpush.msra.mxu0 %v89
  %107 = vmatpush.msra.mxu0 %v88
  %108 = vmatpush.msra.mxu0 %v87
  %109 = vmatpush.msra.mxu0 %v86
  %110 = vmatpush.msra.mxu0 %v85
  %111 = vmatpush.msra.mxu0 %v84
  %112 = vmatpush.msra.mxu0 %v83
  %113 = vmatpush.msra.mxu0 %v82
  %114 = vmatmul.f32.gmra.mxu0 %v81
  %v115 = vpop.f32.mrf.mxu0
  %v116 = vadd.f32 0.0, %v115
  %117 = vdwg.mxu0
  %v118 = vadd.f32 %v44, %v81
  %v119 = vadd.f32 %v118, %v116
  %120 = vst [vmem:[%s4] sm:$0xff] %v119
  // Predicated region
  $region18: #{_mlp_heb_batched_impl.1} parent=0 // pred_check
    _
  $region19: #{_mlp_heb_batched_impl.1} parent=0 // pred_check_branch
    %122 = sbr.rel (0) target = $region21
  $region20: #{_mlp_heb_batched_impl.1} parent=0 // pred_region
    _
  $region21: #{_mlp_heb_batched_impl.1} parent=0 // pred_fallthru
    _
  // Predicated region
  $region22: #{_mlp_heb_batched_impl.1} parent=0 // pred_check
    _
  $region23: #{_mlp_heb_batched_impl.1} parent=0 // pred_check_branch
    %124 = sbr.rel (0) target = $region25
  $region24: #{_mlp_heb_batched_impl.1} parent=0 // pred_region
    _
  $region25: #{_mlp_heb_batched_impl.1} parent=0 // pred_fallthru
    _

</llo_original>
